<compile_context>
chip_gen: v7x
topology: tpu7x:2x2x1
jax: 0.10.0
libtpu: 0.0.40
codegen_flags: <defaults>
</compile_context>

<pallas_src>
import jax
import jax.numpy as jnp
from jax.experimental import pallas as pl
from jax.experimental.pallas import tpu as pltpu

# The 5 non-identity channel shuffles from the module's __init__ (deterministic,
# identity is never in the choice set — matches the original distribution).
_PERMS = ((0, 2, 1), (1, 0, 2), (1, 2, 0), (2, 0, 1), (2, 1, 0))
_LANE = 128


def _copy_kernel(src_tbl_ref, x_ref, o_ref):
    """x_ref/o_ref: (1, 1, tile_rows, 128) VMEM blocks. The permutation is done
    by the input BlockSpec index_map, so the body is a dense block copy."""
    del src_tbl_ref  # consumed only by the index_maps
    o_ref[...] = x_ref[...]


def _round_up(v, m):
    return -(-v // m) * m


def _vmem_capacity_bytes():
    try:
        return int(pltpu.get_tpu_info().vmem_capacity_bytes)
    except Exception:
        return 64 << 20  # conservative fallback (v7x per-TC VMEM)


def _apply_channel_shuffle(x, picks):
    """x: (n, 3, h, w); picks: (n,) int32 in [0, 5) -> channel-shuffled x."""
    n, c, h, w = x.shape
    assert c == 3
    hw = h * w
    itemsize = jnp.dtype(x.dtype).itemsize

    vmem_cap = _vmem_capacity_bytes()
    # Per-block budget: bigger blocks on 128-MiB parts (v5e/v6e), smaller on v7x.
    block_budget = (12 << 20) if vmem_cap >= (100 << 20) else (4 << 20)

    # Lane-dense layout: each channel plane is (rows, 128) full slabs.
    rows = -(-hw // _LANE)
    max_rows = max(8, (block_budget // (_LANE * itemsize)) // 8 * 8)
    tile_rows = min(max_rows, _round_up(rows, 8))
    padded_rows = _round_up(rows, tile_rows)
    num_tiles = padded_rows // tile_rows
    padded_hw = padded_rows * _LANE

    x_flat = x.reshape(n, c, hw)
    if padded_hw != hw:
        x_flat = jnp.pad(x_flat, ((0, 0), (0, 0), (0, padded_hw - hw)))
    x4 = x_flat.reshape(n, c, padded_rows, _LANE)

    # Per-(image, dst-channel) source-channel table, flattened for SMEM prefetch.
    src_tbl = jnp.asarray(_PERMS, dtype=jnp.int32)[picks].reshape(-1)  # (n*3,)

    # True double-buffered footprint (blocks are already dense, no sublane padding).
    block_bytes = tile_rows * _LANE * itemsize
    vmem_limit = max(4 * block_bytes + (4 << 20), 16 << 20)
    vmem_limit = int(min(vmem_limit, vmem_cap - (8 << 20)))

    blk = (1, 1, tile_rows, _LANE)
    out4 = pl.pallas_call(
        _copy_kernel,
        out_shape=jax.ShapeDtypeStruct(x4.shape, x4.dtype),
        grid_spec=pltpu.PrefetchScalarGridSpec(
            num_scalar_prefetch=1,
            grid=(n, c, num_tiles),
            in_specs=[
                # The gather: source channel comes from the prefetched table.
                pl.BlockSpec(blk, lambda i, ch, t, tbl: (i, tbl[i * 3 + ch], t, 0)),
            ],
            out_specs=pl.BlockSpec(blk, lambda i, ch, t, tbl: (i, ch, t, 0)),
        ),
        compiler_params=pltpu.CompilerParams(
            dimension_semantics=("parallel", "parallel", "parallel"),
            vmem_limit_bytes=vmem_limit,
        ),
        cost_estimate=pl.CostEstimate(
            flops=0,
            transcendentals=0,
            bytes_accessed=2 * n * c * padded_hw * itemsize,
        ),
    )(src_tbl, x4)

    out_flat = out4.reshape(n, c, padded_hw)
    if padded_hw != hw:
        out_flat = out_flat[:, :, :hw]
    return out_flat.reshape(n, c, h, w)


def random_color(x, key):
    """JAX/Pallas equivalent of RandomColor.forward.

    x   : (n, c, h, w) array
    key : jax PRNG key (replaces Python's random.choices for determinism)
    """
    n, c, h, w = x.shape
    if c != 3:
        return x  # module is a no-op unless there are exactly 3 channels

    # TODO(synk): host-side random.choices replaced by device-side jax.random
    # with an explicit key (same distribution: uniform over the 5 shuffles).
    picks = jax.random.randint(key, (n,), minval=0, maxval=5, dtype=jnp.int32)
    return _apply_channel_shuffle(x, picks)


if __name__ == "__main__":
    key = jax.random.PRNGKey(0)
    k_data, k_perm = jax.random.split(key)

    perms = jnp.asarray(_PERMS, dtype=jnp.int32)

    def reference(x, n_key):
        n, c, h, w = x.shape
        picks = jax.random.randint(n_key, (n,), 0, 5, dtype=jnp.int32)
        flat_idx = (perms[picks]
                    + (jnp.arange(n, dtype=jnp.int32) * 3)[:, None]).reshape(-1)
        return x.reshape(n * c, h, w)[flat_idx].reshape(n, c, h, w)

    # Main test: c == 3 (the only case where RandomColor acts).
    n, c, h, w = 2, 3, 16, 16
    x = jax.random.normal(k_data, (n, c, h, w), dtype=jnp.float32)
    out = jax.block_until_ready(random_color(x, k_perm))
    ref = reference(x, k_perm)
    assert out.shape == x.shape and out.dtype == x.dtype
    assert jnp.allclose(out, ref)

    # Non-multiple-of-128 spatial size exercises the padding/tiling path.
    x2 = jax.random.normal(k_data, (2, 3, 40, 40), dtype=jnp.float32)
    out2 = jax.block_until_ready(random_color(x2, k_perm))
    assert jnp.allclose(out2, reference(x2, k_perm))

    # Non-3-channel path is an identity pass-through (no kernel launched).
    x4 = jax.random.normal(k_data, (2, 4, 8, 8), dtype=jnp.float32)
    assert jnp.array_equal(random_color(x4, k_perm), x4)

    print("KERNEL_OK")
</pallas_src>

<mosaic_0001>
module attributes {stable_mosaic.version = 11 : i64} {
  func.func @_copy_kernel(%arg0: i32, %arg1: i32, %arg2: i32, %arg3: memref<6xi32, #tpu.memory_space<smem>>, %arg4: memref<1x1x8x128xf32, #tpu.memory_space<vmem>>, %arg5: memref<1x1x8x128xf32, #tpu.memory_space<vmem>>) attributes {dimension_semantics = [#tpu.dimension_semantics<parallel>, #tpu.dimension_semantics<parallel>, #tpu.dimension_semantics<parallel>], iteration_bounds = array<i64: 2, 3, 1>, scalar_prefetch = 1 : i64, scratch_operands = 0 : i64, tpu.core_type = #tpu.core_type<tc>, window_params = [{transform_indices = @transform_0, window_bounds = array<i64: 1, 1, 8, 128>}, {transform_indices = @transform_1, window_bounds = array<i64: 1, 1, 8, 128>}]} {
    %c0 = arith.constant 0 : index
    %c0_0 = arith.constant 0 : index
    %c0_1 = arith.constant 0 : index
    %c0_2 = arith.constant 0 : index
    %0 = vector.load %arg4[%c0, %c0_0, %c0_1, %c0_2] : memref<1x1x8x128xf32, #tpu.memory_space<vmem>>, vector<1x1x8x128xf32>
    %c0_3 = arith.constant 0 : index
    %c0_4 = arith.constant 0 : index
    %c0_5 = arith.constant 0 : index
    %c0_6 = arith.constant 0 : index
    %1 = vector.load %arg5[%c0_3, %c0_4, %c0_5, %c0_6] : memref<1x1x8x128xf32, #tpu.memory_space<vmem>>, vector<1x1x8x128xf32>
    tpu.vector_store %arg5[%c0_3, %c0_4, %c0_5, %c0_6], %0 {strides = array<i32>} : memref<1x1x8x128xf32, #tpu.memory_space<vmem>>, vector<1x1x8x128xf32>,
    return
  }
  func.func @transform_0(%arg0: i32, %arg1: i32, %arg2: i32, %arg3: memref<6xi32, #tpu.memory_space<smem>>) -> (i32, i32, i32, i32) {
    %c3_i32 = arith.constant 3 : i32
    %0 = arith.muli %arg0, %c3_i32 : i32
    %1 = arith.addi %0, %arg1 : i32
    %2 = arith.index_cast %1 : i32 to index
    %3 = memref.load %arg3[%2] : memref<6xi32, #tpu.memory_space<smem>>
    %c0_i32 = arith.constant 0 : i32
    %c0_i32_0 = arith.constant 0 : i32
    return %arg0, %3, %arg2, %c0_i32 : i32, i32, i32, i32
  }
  func.func @transform_1(%arg0: i32, %arg1: i32, %arg2: i32, %arg3: memref<6xi32, #tpu.memory_space<smem>>) -> (i32, i32, i32, i32) {
    %c0_i32 = arith.constant 0 : i32
    %c0_i32_0 = arith.constant 0 : i32
    return %arg0, %arg1, %arg2, %c0_i32 : i32, i32, i32, i32
  }
}

</mosaic_0001>

<llo_original>
// kernel: tpu_custom_call.1
$region0: #{tpu_custom_call.1}
  #allocation0 [shape = 'u32[]', space=smem, size = 0x4, offset = 0x4, fixed_abs, tag = 'smem constant byte address 0x4 - core index']
  #allocation1 [shape = 'u32[144,128]{1,0:T(1,128)}', space=vmem, size = 0x12000, scoped, tag = 'internal scratch']
  #allocation2 [shape = 's32[1]{0}', space=sflag, size = 0x4, scoped, tag = 'scoped memory for tpu_custom_call.1']
  #allocation3 [shape = 'u8[512]{0}', space=smem, size = 0x200, scoped, tag = 'prefetched SMEM operand 0']
  %s0 = inlined_call_operand.hbm [shape: s32[6], index: 0, kind: input, shape index: {}]
  %s1 = inlined_call_operand.hbm [shape: f32[2,3,8,128], index: 1, kind: input, shape index: {}]
  %s2 = inlined_call_operand.hbm [shape: f32[2,3,8,128], index: 2, kind: output, shape index: {}]
  %s3 = sld [smem:[#allocation0]]
  $region41: #{tpu_custom_call.1} parent=0
    _
  %s5 = ssub.s32 1, %s3
  %s6 = scalar_select 0, %s5, %s3
  %8 = dma.hbm_to_smem %s0, 16, [#allocation3], [#allocation2]
  %9 = dma.done [#allocation2], 16
  %10 = sfence
  $region1: #{tpu_custom_call.1} parent=0
    #allocation4 [shape = 'u8[8192]{0}', space=vmem, size = 0x2000, scoped, tag = 'input window, operand 1']
    #allocation5 [shape = 's32[2]{0}', space=sflag, size = 0x8, scoped, tag = 'scoped memory for tpu_custom_call.1']
    #allocation6 [shape = 's32[2]{0}', space=sflag, size = 0x8, scoped, tag = 'scoped memory for tpu_custom_call.1']
    #allocation7 [shape = 'u8[8192]{0}', space=vmem, size = 0x2000, scoped, tag = 'output window, operand 0']
    %11 = vsyncpa [#allocation5], 0
    %s12 = scalar_lea.sflag [#allocation5], 1
    %13 = vsyncpa %s12, 0
    %14 = vsyncpa [#allocation6], 0
    %s15 = scalar_lea.sflag [#allocation6], 1
    %16 = vsyncpa %s15, 0
    loop: start=0, step=1, limit=8
    $region2: #{tpu_custom_call.1} parent=1 // loop_pre_header
      _
    $region3: #{tpu_custom_call.1} parent=1 // loop_header
      %s18 = sphi 0, %s22
      %p19 = scmp.ge.s32.totalorder %s18, 8
      %s25 = sphi 0, %s44
      %s26 = sphi 0, %s40
      %s27 = sphi 0, %s36
      %s28 = sphi 0, %s25
      %s29 = sphi 0, %s26
      %s30 = sphi 0, %s27
      %s31 = sphi 0, %s28
      %s32 = sphi 0, %s29
      %s33 = sphi 0, %s30
      %s57 = sphi 0, %s59
      %s60 = sphi 0, %s57
      %s61 = sphi 0, %s60
      %s77 = sphi 0, %s61
      %s87 = sphi 0, %s89
      %s90 = sphi 0, %s87
      %s91 = sphi 0, %s90
      %s107 = sphi 0, %s91
    $region4: #{tpu_custom_call.1} parent=1 // loop_header_branch
      %21 = sbr.rel (%p19) target = $region8
    $region5: #{tpu_custom_call.1} parent=1 // loop_body
      %s23 = ssub.s32 %s18, 1
      %s24 = ssub.s32 %s18, 2
      %s34 = sadd.s32 1, %s27
      %p35 = scmp.ge.s32.totalorder %s34, 1
      %s36 = scalar_select %p35, 0, %s34
      %s37 = sadd.s32 1, %s26
      %s38 = scalar_select %p35, %s37, %s26
      %p39 = scmp.ge.s32.totalorder %s38, 3
      %s40 = scalar_select %p39, 0, %s38
      %s41 = sadd.s32 1, %s25
      %s42 = scalar_select %p39, %s41, %s25
      %p43 = scmp.ge.s32.totalorder %s42, 2
      %s44 = scalar_select %p43, 0, %s42
      %s45 = smul.u32 %s25, 3
      %s46 = sadd.s32 %s45, %s26
      %s47 = sld [smem:[#allocation3 + %s46]]
      %s48 = smul.u32 %s44, 3
      %s49 = sadd.s32 %s48, %s40
      %s50 = sld [smem:[#allocation3 + %s49]]
      %s51 = ssub.s32 %s25, %s44
      %s52 = ssub.s32 %s47, %s50
      %s53 = sor.u32 %s51, %s52
      %s54 = ssub.s32 %s27, %s36
      %s55 = sor.u32 %s53, %s54
      %p56 = scmp.eq.s32.totalorder %s55, 0
      %s58 = sadd.s32 %s57, 1
      %s59 = scalar_select %p56, %s57, %s58
      %p62 = pneg %p56
      %p63 = scmp.eq.s32.totalorder %s18, 5
      %p64 = por %p62, %p63
      %p65 = scmp.ne.s32.totalorder %s57, %s60
      %p66 = scmp.eq.s32.totalorder %s18, 0
      %p67 = por %p65, %p66
      %p68 = scmp.ne.s32.totalorder %s57, %s60
      %p69 = scmp.eq.s32.totalorder %s23, 5
      %p70 = por %p68, %p69
      %p71 = scmp.ne.s32.totalorder %s60, %s61
      %p72 = scmp.eq.s32.totalorder %s23, 0
      %p73 = por %p71, %p72
      %p74 = scmp.ne.s32.totalorder %s60, %s61
      %p75 = scmp.eq.s32.totalorder %s24, 5
      %p76 = por %p74, %p75
      %p78 = scmp.ne.s32.totalorder %s61, %s77
      %p79 = scmp.eq.s32.totalorder %s24, 0
      %p80 = por %p78, %p79
      %s81 = ssub.s32 %s25, %s44
      %s82 = ssub.s32 %s26, %s40
      %s83 = sor.u32 %s81, %s82
      %s84 = ssub.s32 %s27, %s36
      %s85 = sor.u32 %s83, %s84
      %p86 = scmp.eq.s32.totalorder %s85, 0
      %s88 = sadd.s32 %s87, 1
      %s89 = scalar_select %p86, %s87, %s88
      %p92 = pneg %p86
      %p93 = scmp.eq.s32.totalorder %s18, 5
      %p94 = por %p92, %p93
      %p95 = scmp.ne.s32.totalorder %s87, %s90
      %p96 = scmp.eq.s32.totalorder %s18, 0
      %p97 = por %p95, %p96
      %p98 = scmp.ne.s32.totalorder %s87, %s90
      %p99 = scmp.eq.s32.totalorder %s23, 5
      %p100 = por %p98, %p99
      %p101 = scmp.ne.s32.totalorder %s90, %s91
      %p102 = scmp.eq.s32.totalorder %s23, 0
      %p103 = por %p101, %p102
      %p104 = scmp.ne.s32.totalorder %s90, %s91
      %p105 = scmp.eq.s32.totalorder %s24, 5
      %p106 = por %p104, %p105
      %p108 = scmp.ne.s32.totalorder %s91, %s107
      %p109 = scmp.eq.s32.totalorder %s24, 0
      %p110 = por %p108, %p109
      %p111 = scmp.le.s32.totalorder 1, %s18
      %p112 = scmp.lt.s32.totalorder %s18, 7
      %p113 = pnand %p111, %p112
      %p114 = pneg %p113
      // Predicated region
      $region9: #{tpu_custom_call.1} parent=5 // pred_check
        _
      $region10: #{tpu_custom_call.1} parent=5 // pred_check_branch
        %116 = sbr.rel (%p113) target = $region12
      $region11: #{tpu_custom_call.1} parent=5 // pred_region
        %s117 = ssub.s32 %s18, 1
      $region12: #{tpu_custom_call.1} parent=5 // pred_fallthru
        _
      %p118 = scmp.lt.s32.totalorder %s18, 6
      // Predicated region
      $region13: #{tpu_custom_call.1} parent=5 // pred_check
        %p119 = pneg %p118
      $region14: #{tpu_custom_call.1} parent=5 // pred_check_branch
        %121 = sbr.rel (%p119) target = $region16
      $region15: #{tpu_custom_call.1} parent=5 // pred_region
        // Predicated region
        $region17: #{tpu_custom_call.1} parent=15 // pred_check
          %p122 = pneg %p67
        $region18: #{tpu_custom_call.1} parent=15 // pred_check_branch
          %124 = sbr.rel (%p122) target = $region20
        $region19: #{tpu_custom_call.1} parent=15 // pred_region
          %s125 = sand.u32 %s57, 1
          %s126 = scalar_lea.sflag [#allocation5], %s125
          %s127 = sand.u32 %s57, 1
          %s128 = smul.addr %s127, 8
          %s129 = scalar_lea.vmem [#allocation4], %s128
          %s130 = smul.u32 %s25, 3
          %s131 = sadd.s32 %s130, %s26
          %s132 = sld [smem:[#allocation3 + %s131]]
          %s134 = ssub.s32 128, 128
          %135 = vsyncadd %s126, %s134
          %s136 = sadd.s32 %s27, %s132
          %s137 = smul.addr %s25, 3
          %s138 = sadd.s32 %s136, %s137
          %s139 = smul.addr %s138, 128
          %s140 = scalar_lea.hbm %s1, %s139
          %s142 = sshll.u32 %s129, 4
          %s143 = int_to_ptr.vmem [resolvable:$true] %s142
          %145 = dma.hbm_to_vmem [thread:$0]  %s140, 128, %s143, %s126
        $region20: #{tpu_custom_call.1} parent=15 // pred_fallthru
          _
      $region16: #{tpu_custom_call.1} parent=5 // pred_fallthru
        _
      %p146 = scmp.le.s32.totalorder 1, %s18
      %p147 = scmp.lt.s32.totalorder %s18, 7
      %p148 = pnand %p146, %p147
      %p149 = pneg %p148
      // Predicated region
      $region21: #{tpu_custom_call.1} parent=5 // pred_check
        _
      $region22: #{tpu_custom_call.1} parent=5 // pred_check_branch
        %151 = sbr.rel (%p148) target = $region24
      $region23: #{tpu_custom_call.1} parent=5 // pred_region
        %s152 = ssub.s32 %s18, 1
        %s153 = sand.u32 %s60, 1
        %s154 = scalar_lea.sflag [#allocation5], %s153
        %s155 = sand.u32 %s60, 1
        %s156 = smul.addr %s155, 8
        %s157 = scalar_lea.vmem [#allocation4], %s156
        // Predicated region
        $region25: #{tpu_custom_call.1} parent=23 // pred_check
          %p158 = pneg %p73
        $region26: #{tpu_custom_call.1} parent=23 // pred_check_branch
          %160 = sbr.rel (%p158) target = $region28
        $region27: #{tpu_custom_call.1} parent=23 // pred_region
          %161 = dma.done %s154, 128
        $region28: #{tpu_custom_call.1} parent=23 // pred_fallthru
          _
        %s162 = sand.u32 %s60, 1
        %s163 = scalar_lea.sflag [#allocation5], %s162
        %s164 = sand.u32 %s60, 1
        %s165 = smul.addr %s164, 8
        %s166 = scalar_lea.vmem [#allocation4], %s165
        %p167 = pneg %p73
        %p168 = pneg %p70
        %p169 = pneg %p103
        %p170 = pneg %p100
        %s171 = sand.u32 %s90, 1
        %s172 = scalar_lea.sflag [#allocation6], %s171
        %s173 = sand.u32 %s90, 1
        %s174 = smul.addr %s173, 8
        %s175 = scalar_lea.vmem [#allocation7], %s174
        %s176 = smul.u32 %s28, 3
        %s177 = sadd.s32 %s176, %s29
        %s178 = sld [smem:[#allocation3 + %s177]]
        %v179 = vld [vmem:[%s157] sm:$0xff]
        %180 = vst [vmem:[%s175] sm:$0xff] %v179
        %s181 = sand.u32 %s90, 1
        %s182 = scalar_lea.sflag [#allocation6], %s181
        %s183 = sand.u32 %s90, 1
        %s184 = smul.addr %s183, 8
        %s185 = scalar_lea.vmem [#allocation7], %s184
        // Predicated region
        $region29: #{tpu_custom_call.1} parent=23 // pred_check
          %p186 = pneg %p100
        $region30: #{tpu_custom_call.1} parent=23 // pred_check_branch
          %188 = sbr.rel (%p186) target = $region32
        $region31: #{tpu_custom_call.1} parent=23 // pred_region
          %s190 = ssub.s32 128, 128
          %191 = vsyncadd %s182, %s190
          %s192 = sadd.s32 %s30, %s29
          %s193 = smul.addr %s28, 3
          %s194 = sadd.s32 %s192, %s193
          %s195 = smul.addr %s194, 128
          %s196 = scalar_lea.hbm %s2, %s195
          %s198 = sshll.u32 %s185, 4
          %s199 = int_to_ptr.vmem [resolvable:$true] %s198
          %201 = dma.vmem_to_hbm [thread:$0]  %s199, 128, %s196, %s182
        $region32: #{tpu_custom_call.1} parent=23 // pred_fallthru
          _
      $region24: #{tpu_custom_call.1} parent=5 // pred_fallthru
        _
      %p202 = scmp.le.s32.totalorder 2, %s18
      // Predicated region
      $region33: #{tpu_custom_call.1} parent=5 // pred_check
        %p203 = pneg %p202
      $region34: #{tpu_custom_call.1} parent=5 // pred_check_branch
        %205 = sbr.rel (%p203) target = $region36
      $region35: #{tpu_custom_call.1} parent=5 // pred_region
        %s206 = ssub.s32 %s18, 2
        // Predicated region
        $region37: #{tpu_custom_call.1} parent=35 // pred_check
          %p207 = pneg %p106
        $region38: #{tpu_custom_call.1} parent=35 // pred_check_branch
          %209 = sbr.rel (%p207) target = $region40
        $region39: #{tpu_custom_call.1} parent=35 // pred_region
          %s210 = sand.u32 %s91, 1
          %s211 = scalar_lea.sflag [#allocation6], %s210
          %s212 = sand.u32 %s91, 1
          %s213 = smul.addr %s212, 8
          %s214 = scalar_lea.vmem [#allocation7], %s213
          %215 = dma.done %s211, 128
        $region40: #{tpu_custom_call.1} parent=35 // pred_fallthru
          _
      $region36: #{tpu_custom_call.1} parent=5 // pred_fallthru
        _
    $region6: #{tpu_custom_call.1} parent=1 // loop_footer
      %s22 = sadd.s32 1, %s18
    $region7: #{tpu_custom_call.1} parent=1 // loop_footer_branch
      %17 = sbr.rel target = $region3
    $region8: #{tpu_custom_call.1} parent=1 // loop_exit
      _
    %216 = vsyncpa [#allocation5], 1
    %s217 = scalar_lea.sflag [#allocation5], 1
    %218 = vsyncpa %s217, 1
    %219 = vsyncpa [#allocation6], 1
    %s220 = scalar_lea.sflag [#allocation6], 1
    %221 = vsyncpa %s220, 1

</llo_original>
